<compile_context>
chip_gen: v7x
topology: tpu7x:2x2x1
jax: 0.10.0
libtpu: 0.0.40
codegen_flags: <defaults>
</compile_context>

<pallas_src>
import jax
import jax.numpy as jnp
from jax.experimental import pallas as pl
from jax.experimental.pallas import tpu as pltpu


def _round_up(a, m):
    return ((a + m - 1) // m) * m


def _mcc_kernel(x_ref, w_ref, b_ref, o_ref, acc_ref):
    # x_ref: (TB, TS, H)   w_ref: (H, Cp)   b_ref: (1, Cp)   o_ref: (TB, Cp)
    # acc_ref: (TB, H) f32 running-max accumulator, resident across the seq grid axis.
    s = pl.program_id(1)

    @pl.when(s == 0)
    def _init():
        acc_ref[...] = jnp.full(acc_ref.shape, -jnp.inf, dtype=acc_ref.dtype)

    # Partial max over this sequence tile, folded into the running accumulator (VPU max).
    partial = jnp.max(x_ref[...].astype(jnp.float32), axis=1)          # (TB, H)
    acc_ref[...] = jnp.maximum(acc_ref[...], partial)

    @pl.when(s == pl.num_programs(1) - 1)
    def _finish():
        pooled = acc_ref[...]                                          # (TB, H)
        out = jnp.dot(pooled, w_ref[...].astype(jnp.float32),
                      preferred_element_type=jnp.float32)              # MXU, lane-dense Cp
        o_ref[...] = (out + b_ref[...]).astype(o_ref.dtype)


def multiclass_classification(x, weight, bias, *, tb=None, ts=None):
    """x: (B, S, H); weight: (C, H) (PyTorch Linear layout); bias: (C,). Returns (B, C) f32."""
    B, S, H = x.shape
    C = weight.shape[0]

    # ---------------- tile sizing ----------------
    if tb is None:
        tb = min(_round_up(B, 8), 256)                    # fills MXU rows on v6e/v7x
    tb = _round_up(min(tb, _round_up(B, 8)), 8)

    h_lane = _round_up(H, 128)                            # lane-padded width of an x tile
    if ts is None:
        # keep a single x tile around <= 4 MiB (8 MiB double-buffered)
        max_ts = max(8, (4 * 1024 * 1024) // (tb * h_lane * 4) // 8 * 8)
        ts = min(_round_up(S, 8), max_ts, 512)
    ts = max(8, _round_up(ts, 8))

    B_pad = _round_up(B, tb)
    S_pad = _round_up(S, ts)
    C_pad = _round_up(C, 128)                             # lane-dense weight / output

    # ---------------- wrapper-side padding (glue only) ----------------
    xp = x
    if S_pad != S:
        # -inf padding never wins the max reduction
        xp = jnp.pad(xp, ((0, 0), (0, S_pad - S), (0, 0)), constant_values=-jnp.inf)
    if B_pad != B:
        xp = jnp.pad(xp, ((0, B_pad - B), (0, 0), (0, 0)))  # padded rows sliced off below
    w_t = jnp.pad(weight.T.astype(jnp.float32), ((0, 0), (0, C_pad - C)))
    b2 = jnp.pad(bias.astype(jnp.float32), (0, C_pad - C)).reshape(1, C_pad)

    grid = (B_pad // tb, S_pad // ts)

    # ---------------- VMEM budget + cost hint ----------------
    need = (2 * tb * ts * h_lane * 4          # double-buffered x tiles
            + 2 * _round_up(H, 8) * C_pad * 4  # weight
            + 2 * 8 * C_pad * 4                # bias
            + 2 * tb * C_pad * 4               # output
            + tb * h_lane * 4)                 # accumulator scratch
    vmem_limit = int(min(max(2 * need, 16 * 1024 * 1024), 48 * 1024 * 1024))

    cost = pl.CostEstimate(
        flops=int(B_pad * S_pad * H + 2 * B_pad * H * C_pad),
        transcendentals=0,
        bytes_accessed=int(4 * (B_pad * S_pad * H + H * C_pad + C_pad + B_pad * C_pad)),
    )

    out = pl.pallas_call(
        _mcc_kernel,
        out_shape=jax.ShapeDtypeStruct((B_pad, C_pad), jnp.float32),
        grid_spec=pltpu.PrefetchScalarGridSpec(
            num_scalar_prefetch=0,
            grid=grid,
            in_specs=[
                pl.BlockSpec((tb, ts, H), lambda b, s: (b, s, 0)),
                pl.BlockSpec((H, C_pad), lambda b, s: (0, 0)),
                pl.BlockSpec((1, C_pad), lambda b, s: (0, 0)),
            ],
            out_specs=pl.BlockSpec((tb, C_pad), lambda b, s: (b, 0)),
            scratch_shapes=[pltpu.VMEM((tb, H), jnp.float32)],
        ),
        compiler_params=pltpu.CompilerParams(
            dimension_semantics=("parallel", "arbitrary"),
            vmem_limit_bytes=vmem_limit,
        ),
        cost_estimate=cost,
    )(xp, w_t, b2)

    return out[:B, :C]


if __name__ == "__main__":
    # Shapes consistent with the module: seq_len=8, word_len=1 -> pooling_len=8.
    B, S, H, C = 8, 8, 32, 16

    key = jax.random.PRNGKey(0)
    keys = jax.random.split(key, 6)
    x = jax.random.normal(keys[0], (B, S, H), dtype=jnp.float32)
    weight = jax.random.normal(keys[1], (C, H), dtype=jnp.float32) * 0.1   # PyTorch (C, H)
    bias = jax.random.normal(keys[2], (C,), dtype=jnp.float32) * 0.1

    out = jax.block_until_ready(multiclass_classification(x, weight, bias))
    ref = jnp.max(x, axis=1) @ weight.T + bias
    assert out.shape == (B, C)
    assert jnp.allclose(out, ref, atol=1e-5, rtol=1e-5), "mismatch vs reference (aligned)"

    # Second small case exercising batch/seq/class padding and the multi-step seq reduction.
    B2, S2, H2, C2 = 10, 12, 32, 16
    x2 = jax.random.normal(keys[3], (B2, S2, H2), dtype=jnp.float32)
    w2 = jax.random.normal(keys[4], (C2, H2), dtype=jnp.float32) * 0.1
    b2 = jax.random.normal(keys[5], (C2,), dtype=jnp.float32) * 0.1

    out2 = jax.block_until_ready(multiclass_classification(x2, w2, b2, tb=16, ts=8))
    ref2 = jnp.max(x2, axis=1) @ w2.T + b2
    assert out2.shape == (B2, C2)
    assert jnp.allclose(out2, ref2, atol=1e-5, rtol=1e-5), "mismatch vs reference (padded)"

    print("KERNEL_OK")
</pallas_src>

<mosaic_0001>
module attributes {stable_mosaic.version = 11 : i64} {
  func.func @_mcc_kernel(%arg0: i32, %arg1: i32, %arg2: memref<8x8x32xf32, #tpu.memory_space<vmem>>, %arg3: memref<32x128xf32, #tpu.memory_space<vmem>>, %arg4: memref<1x128xf32, #tpu.memory_space<vmem>>, %arg5: memref<8x128xf32, #tpu.memory_space<vmem>>, %arg6: memref<8x32xf32, #tpu.memory_space<vmem>>) attributes {dimension_semantics = [#tpu.dimension_semantics<parallel>, #tpu.dimension_semantics<arbitrary>], iteration_bounds = array<i64: 1, 1>, scalar_prefetch = 0 : i64, scratch_operands = 1 : i64, tpu.core_type = #tpu.core_type<tc>, window_params = [{transform_indices = @transform_0, window_bounds = array<i64: 8, 8, 32>}, {pipeline_mode = #tpu.pipeline_mode<synchronous>, transform_indices = @transform_1, window_bounds = array<i64: 32, 128>}, {pipeline_mode = #tpu.pipeline_mode<synchronous>, transform_indices = @transform_2, window_bounds = array<i64: 1, 128>}, {transform_indices = @transform_3, window_bounds = array<i64: 8, 128>}]} {
    %c0_i32 = arith.constant 0 : i32
    %0 = arith.cmpi eq, %arg1, %c0_i32 : i32
    %1 = arith.extui %0 : i1 to i32
    %c0_i32_0 = arith.constant 0 : i32
    %2 = arith.cmpi ne, %1, %c0_i32_0 : i32
    scf.if %2 {
      %cst_9 = arith.constant 0xFF800000 : f32
      %11 = vector.broadcast %cst_9 : f32 to vector<8x32xf32>
      %c0_10 = arith.constant 0 : index
      %c0_11 = arith.constant 0 : index
      %12 = vector.load %arg6[%c0_10, %c0_11] : memref<8x32xf32, #tpu.memory_space<vmem>>, vector<8x32xf32>
      tpu.vector_store %arg6[%c0_10, %c0_11], %11 {strides = array<i32>} : memref<8x32xf32, #tpu.memory_space<vmem>>, vector<8x32xf32>,
    } else {
    }
    %c0 = arith.constant 0 : index
    %c0_1 = arith.constant 0 : index
    %c0_2 = arith.constant 0 : index
    %3 = vector.load %arg2[%c0, %c0_1, %c0_2] : memref<8x8x32xf32, #tpu.memory_space<vmem>>, vector<8x8x32xf32>
    %cst = arith.constant dense<0xFF800000> : vector<8x32xf32>
    %4 = vector.multi_reduction <maximumf>, %3, %cst [1] : vector<8x8x32xf32> to vector<8x32xf32>
    %c0_3 = arith.constant 0 : index
    %c0_4 = arith.constant 0 : index
    %5 = vector.load %arg6[%c0_3, %c0_4] : memref<8x32xf32, #tpu.memory_space<vmem>>, vector<8x32xf32>
    %6 = arith.maximumf %5, %4 : vector<8x32xf32>
    %c0_5 = arith.constant 0 : index
    %c0_6 = arith.constant 0 : index
    %7 = vector.load %arg6[%c0_5, %c0_6] : memref<8x32xf32, #tpu.memory_space<vmem>>, vector<8x32xf32>
    tpu.vector_store %arg6[%c0_5, %c0_6], %6 {strides = array<i32>} : memref<8x32xf32, #tpu.memory_space<vmem>>, vector<8x32xf32>,
    %c0_i32_7 = arith.constant 0 : i32
    %8 = arith.cmpi eq, %arg1, %c0_i32_7 : i32
    %9 = arith.extui %8 : i1 to i32
    %c0_i32_8 = arith.constant 0 : i32
    %10 = arith.cmpi ne, %9, %c0_i32_8 : i32
    scf.if %10 {
      %c0_9 = arith.constant 0 : index
      %c0_10 = arith.constant 0 : index
      %11 = vector.load %arg6[%c0_9, %c0_10] : memref<8x32xf32, #tpu.memory_space<vmem>>, vector<8x32xf32>
      %c0_11 = arith.constant 0 : index
      %c0_12 = arith.constant 0 : index
      %12 = vector.load %arg3[%c0_11, %c0_12] : memref<32x128xf32, #tpu.memory_space<vmem>>, vector<32x128xf32>
      %cst_13 = arith.constant dense<0.000000e+00> : vector<8x128xf32>
      %13 = tpu.matmul %11, %12, %cst_13 {dimension_numbers = #tpu.dot_dimension_numbers<[1], [0], [0], [1], [0, 0, 1, 1], [], []>} : vector<8x32xf32>, vector<32x128xf32>, vector<8x128xf32> -> vector<8x128xf32>
      %c0_14 = arith.constant 0 : index
      %c0_15 = arith.constant 0 : index
      %14 = vector.load %arg4[%c0_14, %c0_15] : memref<1x128xf32, #tpu.memory_space<vmem>>, vector<1x128xf32>
      %15 = vector.broadcast %14 : vector<1x128xf32> to vector<8x128xf32>
      %16 = arith.addf %13, %15 : vector<8x128xf32>
      %c0_16 = arith.constant 0 : index
      %c0_17 = arith.constant 0 : index
      %17 = vector.load %arg5[%c0_16, %c0_17] : memref<8x128xf32, #tpu.memory_space<vmem>>, vector<8x128xf32>
      tpu.vector_store %arg5[%c0_16, %c0_17], %16 {strides = array<i32>} : memref<8x128xf32, #tpu.memory_space<vmem>>, vector<8x128xf32>,
    } else {
    }
    return
  }
  func.func @transform_0(%arg0: i32, %arg1: i32) -> (i32, i32, i32) {
    %c0_i32 = arith.constant 0 : i32
    %c0_i32_0 = arith.constant 0 : i32
    return %arg0, %arg1, %c0_i32 : i32, i32, i32
  }
  func.func @transform_1(%arg0: i32, %arg1: i32) -> (i32, i32) {
    %c0_i32 = arith.constant 0 : i32
    %c0_i32_0 = arith.constant 0 : i32
    %c0_i32_1 = arith.constant 0 : i32
    return %c0_i32, %c0_i32_0 : i32, i32
  }
  func.func @transform_2(%arg0: i32, %arg1: i32) -> (i32, i32) {
    %c0_i32 = arith.constant 0 : i32
    %c0_i32_0 = arith.constant 0 : i32
    %c0_i32_1 = arith.constant 0 : i32
    return %c0_i32, %c0_i32_0 : i32, i32
  }
  func.func @transform_3(%arg0: i32, %arg1: i32) -> (i32, i32) {
    %c0_i32 = arith.constant 0 : i32
    %c0_i32_0 = arith.constant 0 : i32
    return %arg0, %c0_i32 : i32, i32
  }
}

</mosaic_0001>

<llo_original>
// kernel: tpu_custom_call.1
$region0: #{tpu_custom_call.1}
  #allocation0 [shape = 'u32[]', space=smem, size = 0x4, offset = 0x4, fixed_abs, tag = 'smem constant byte address 0x4 - core index']
  #allocation1 [shape = 'u32[144,128]{1,0:T(1,128)}', space=vmem, size = 0x12000, scoped, tag = 'internal scratch']
  #allocation2 [shape = 'f32[8,32]{1,0:T(8,128)}', space=vmem, size = 0x1000, scoped, tag = 'scratch operand']
  %s0 = inlined_call_operand.hbm [shape: f32[8,8,32], index: 0, kind: input, shape index: {}]
  %s1 = inlined_call_operand.hbm [shape: f32[32,128], index: 1, kind: input, shape index: {}]
  %s2 = inlined_call_operand.vmem [shape: f32[1,128], index: 2, kind: input, shape index: {}]
  %s3 = inlined_call_operand.hbm [shape: f32[8,128], index: 3, kind: output, shape index: {}]
  %s4 = sld [smem:[#allocation0]]
  $region38: #{tpu_custom_call.1} parent=0
    _
  %s6 = ssub.s32 1, %s4
  %s7 = scalar_select 0, %s6, %s4
  $region1: #{tpu_custom_call.1} parent=0
    #allocation3 [shape = 'u8[32768]{0}', space=vmem, size = 0x8000, scoped, tag = 'input window, operand 0, single buffered']
    #allocation4 [shape = 's32[1]{0}', space=sflag, size = 0x4, scoped, tag = 'scoped memory for tpu_custom_call.1']
    #allocation5 [shape = 's32[1]{0}', space=sflag, size = 0x4, scoped, tag = 'scoped memory for tpu_custom_call.1']
    #allocation6 [shape = 'u8[16384]{0}', space=vmem, size = 0x4000, scoped, tag = 'input window, operand 1, single buffered']
    #allocation7 [shape = 's32[1]{0}', space=sflag, size = 0x4, scoped, tag = 'scoped memory for tpu_custom_call.1']
    #allocation8 [shape = 'u8[4096]{0}', space=vmem, size = 0x1000, scoped, tag = 'output window, operand 0, single buffered']
    %8 = vsyncpa [#allocation4], 0
    %9 = vsyncpa [#allocation7], 0
    %10 = vsyncpa [#allocation5], 0
    // Predicated region
    $region2: #{tpu_custom_call.1} parent=1 // pred_check
      _
    $region3: #{tpu_custom_call.1} parent=1 // pred_check_branch
      %12 = sbr.rel (0) target = $region5
    $region4: #{tpu_custom_call.1} parent=1 // pred_region
      %s14 = ssub.s32 1024, 1024
      %15 = vsyncadd [#allocation4], %s14
      %s16 = sshll.u32 [#allocation3], 4
      %s17 = int_to_ptr.vmem [resolvable:$true] %s16
      %22 = dma.hbm_to_vmem [thread:$0]  %s0, 1024, %s17, [#allocation4], 128, 128, 8
    $region5: #{tpu_custom_call.1} parent=1 // pred_fallthru
      _
    // Predicated region
    $region6: #{tpu_custom_call.1} parent=1 // pred_check
      _
    $region7: #{tpu_custom_call.1} parent=1 // pred_check_branch
      %24 = sbr.rel (0) target = $region9
    $region8: #{tpu_custom_call.1} parent=1 // pred_region
      %s26 = ssub.s32 512, 512
      %27 = vsyncadd [#allocation7], %s26
      %s28 = sshll.u32 [#allocation6], 4
      %s29 = int_to_ptr.vmem [resolvable:$true] %s28
      %34 = dma.hbm_to_vmem [thread:$0]  %s1, 512, %s29, [#allocation7], 128, 128, 8
    $region9: #{tpu_custom_call.1} parent=1 // pred_fallthru
      _
    // Predicated region
    $region10: #{tpu_custom_call.1} parent=1 // pred_check
      _
    $region11: #{tpu_custom_call.1} parent=1 // pred_check_branch
      %36 = sbr.rel (0) target = $region13
    $region12: #{tpu_custom_call.1} parent=1 // pred_region
      _
    $region13: #{tpu_custom_call.1} parent=1 // pred_fallthru
      _
    // Predicated region
    $region14: #{tpu_custom_call.1} parent=1 // pred_check
      _
    $region15: #{tpu_custom_call.1} parent=1 // pred_check_branch
      %38 = sbr.rel (0) target = $region17
    $region16: #{tpu_custom_call.1} parent=1 // pred_region
      %39 = dma.done [#allocation4], 1024
    $region17: #{tpu_custom_call.1} parent=1 // pred_fallthru
      _
    // Predicated region
    $region18: #{tpu_custom_call.1} parent=1 // pred_check
      _
    $region19: #{tpu_custom_call.1} parent=1 // pred_check_branch
      %41 = sbr.rel (0) target = $region21
    $region20: #{tpu_custom_call.1} parent=1 // pred_region
      %42 = dma.done [#allocation7], 512
    $region21: #{tpu_custom_call.1} parent=1 // pred_fallthru
      _
    %p43 = scmp.eq.s32.totalorder 0, 0
    // Predicated region
    $region22: #{tpu_custom_call.1} parent=1 // pred_check
      %p44 = pneg %p43
    $region23: #{tpu_custom_call.1} parent=1 // pred_check_branch
      %46 = sbr.rel (%p44) target = $region25
    $region24: #{tpu_custom_call.1} parent=1 // pred_region
      %vm47 = vcmask 261120
      %48 = vst.msk [vmem:[#allocation2] sm:$0xff] %vm47, -inf
    $region25: #{tpu_custom_call.1} parent=1 // pred_fallthru
      _
    %v49 = vld [vmem:[#allocation3] sm:$0xff]
    %v50 = vld [vmem:[#allocation3 + $0x8] sm:$0xff]
    %v51 = vld [vmem:[#allocation3 + $0x10] sm:$0xff]
    %v52 = vld [vmem:[#allocation3 + $0x18] sm:$0xff]
    %v53 = vld [vmem:[#allocation3 + $0x20] sm:$0xff]
    %v54 = vld [vmem:[#allocation3 + $0x28] sm:$0xff]
    %v55 = vld [vmem:[#allocation3 + $0x30] sm:$0xff]
    %v56 = vld [vmem:[#allocation3 + $0x38] sm:$0xff]
    %vm57 = vcmask 261120
    %v58 = vsel %vm57, %v49, -inf
    %v59 = vrot.slane %v58, 4
    %v60 = vmax.f32 %v58, %v59
    %v61 = vrot.slane %v60, 2
    %v62 = vmax.f32 %v60, %v61
    %v63 = vrot.slane %v62, 1
    %v64 = vmax.f32 %v62, %v63
    %v65 = vsel %vm57, %v50, -inf
    %v66 = vrot.slane %v65, 4
    %v67 = vmax.f32 %v65, %v66
    %v68 = vrot.slane %v67, 2
    %v69 = vmax.f32 %v67, %v68
    %v70 = vrot.slane %v69, 1
    %v71 = vmax.f32 %v69, %v70
    %v72 = vsel %vm57, %v51, -inf
    %v73 = vrot.slane %v72, 4
    %v74 = vmax.f32 %v72, %v73
    %v75 = vrot.slane %v74, 2
    %v76 = vmax.f32 %v74, %v75
    %v77 = vrot.slane %v76, 1
    %v78 = vmax.f32 %v76, %v77
    %v79 = vsel %vm57, %v52, -inf
    %v80 = vrot.slane %v79, 4
    %v81 = vmax.f32 %v79, %v80
    %v82 = vrot.slane %v81, 2
    %v83 = vmax.f32 %v81, %v82
    %v84 = vrot.slane %v83, 1
    %v85 = vmax.f32 %v83, %v84
    %v86 = vsel %vm57, %v53, -inf
    %v87 = vrot.slane %v86, 4
    %v88 = vmax.f32 %v86, %v87
    %v89 = vrot.slane %v88, 2
    %v90 = vmax.f32 %v88, %v89
    %v91 = vrot.slane %v90, 1
    %v92 = vmax.f32 %v90, %v91
    %v93 = vsel %vm57, %v54, -inf
    %v94 = vrot.slane %v93, 4
    %v95 = vmax.f32 %v93, %v94
    %v96 = vrot.slane %v95, 2
    %v97 = vmax.f32 %v95, %v96
    %v98 = vrot.slane %v97, 1
    %v99 = vmax.f32 %v97, %v98
    %v100 = vsel %vm57, %v55, -inf
    %v101 = vrot.slane %v100, 4
    %v102 = vmax.f32 %v100, %v101
    %v103 = vrot.slane %v102, 2
    %v104 = vmax.f32 %v102, %v103
    %v105 = vrot.slane %v104, 1
    %v106 = vmax.f32 %v104, %v105
    %v107 = vsel %vm57, %v56, -inf
    %v108 = vrot.slane %v107, 4
    %v109 = vmax.f32 %v107, %v108
    %v110 = vrot.slane %v109, 2
    %v111 = vmax.f32 %v109, %v110
    %v112 = vrot.slane %v111, 1
    %v113 = vmax.f32 %v111, %v112
    %v114 = vld [vmem:[#allocation2] sm:$0xff]
    %vm123 = vcmask 1041409
    %v124 = vsel %vm123, %v71, %v64
    %vm125 = vcmask 1042434
    %v126 = vsel %vm125, %v78, %v124
    %vm127 = vcmask 1043459
    %v128 = vsel %vm127, %v85, %v126
    %vm129 = vcmask 1044484
    %v130 = vsel %vm129, %v92, %v128
    %vm131 = vcmask 1045509
    %v132 = vsel %vm131, %v99, %v130
    %vm133 = vcmask 1046534
    %v134 = vsel %vm133, %v106, %v132
    %vm135 = vcmask 1047559
    %v136 = vsel %vm135, %v113, %v134
    %v138 = vmax.f32 %v114, %v136
    %139 = vst.msk [vmem:[#allocation2] sm:$0xff] %vm57, %v138
    // Predicated region
    $region26: #{tpu_custom_call.1} parent=1 // pred_check
      %p140 = pneg %p43
    $region27: #{tpu_custom_call.1} parent=1 // pred_check_branch
      %142 = sbr.rel (%p140) target = $region29
    $region28: #{tpu_custom_call.1} parent=1 // pred_region
      %v143 = vld [vmem:[#allocation2] sm:$0xff]
      %v144 = vld [vmem:[#allocation6] sm:$0xff]
      %v145 = vld [vmem:[#allocation6 + $0x8] sm:$0xff]
      %v146 = vld [vmem:[#allocation6 + $0x10] sm:$0xff]
      %v147 = vld [vmem:[#allocation6 + $0x18] sm:$0xff]
      %v148 = vld [vmem:[%s2] sm:$0x1]
      %v150 = vlaneseq
      %v151 = vshrl.u32 %v150, 7
      %v152 = vsub.s32 0, %v151
      %v153 = vrot.slane %v148, %v152
      %v156 = vsel %vm57, %v143, 0
      %158 = vmatprep.subr.mxu0 0.0
      %159 = vmatpush1.msra.mxu0 %v144
      %160 = vmatprep.subr.mxu0 0.0
      %161 = vmatpush1.msra.mxu0 %v145
      %162 = vmatprep.subr.mxu0 0.0
      %163 = vmatpush1.msra.mxu0 %v146
      %164 = vmatprep.subr.mxu0 0.0
      %165 = vmatpush1.msra.mxu0 %v147
      %166 = vmatprep.subr.mxu0 0.0
      %167 = vmatpush1.msra.mxu0 0.0
      %168 = vmatprep.subr.mxu0 0.0
      %169 = vmatpush1.msra.mxu0 0.0
      %170 = vmatprep.subr.mxu0 0.0
      %171 = vmatpush1.msra.mxu0 0.0
      %172 = vmatprep.subr.mxu0 0.0
      %173 = vmatpush1.msra.mxu0 0.0
      %174 = vmatprep.subr.mxu0 0.0
      %175 = vmatpush1.msra.mxu0 0.0
      %176 = vmatprep.subr.mxu0 0.0
      %177 = vmatpush1.msra.mxu0 0.0
      %178 = vmatprep.subr.mxu0 0.0
      %179 = vmatpush1.msra.mxu0 0.0
      %180 = vmatprep.subr.mxu0 0.0
      %181 = vmatpush1.msra.mxu0 0.0
      %182 = vmatprep.subr.mxu0 0.0
      %183 = vmatpush1.msra.mxu0 0.0
      %184 = vmatprep.subr.mxu0 0.0
      %185 = vmatpush1.msra.mxu0 0.0
      %186 = vmatprep.subr.mxu0 0.0
      %187 = vmatpush1.msra.mxu0 0.0
      %188 = vmatprep.subr.mxu0 0.0
      %189 = vmatpush1.msra.mxu0 0.0
      %190 = vmatprep.subr.mxu0 0.0
      %191 = vmatpush1.msra.mxu0 0.0
      %192 = vmatprep.subr.mxu0 0.0
      %193 = vmatpush1.msra.mxu0 0.0
      %194 = vmatprep.subr.mxu0 0.0
      %195 = vmatpush1.msra.mxu0 0.0
      %196 = vmatprep.subr.mxu0 0.0
      %197 = vmatpush1.msra.mxu0 0.0
      %198 = vmatprep.subr.mxu0 0.0
      %199 = vmatpush1.msra.mxu0 0.0
      %200 = vmatprep.subr.mxu0 0.0
      %201 = vmatpush1.msra.mxu0 0.0
      %202 = vmatprep.subr.mxu0 0.0
      %203 = vmatpush1.msra.mxu0 0.0
      %204 = vmatprep.subr.mxu0 0.0
      %205 = vmatpush1.msra.mxu0 0.0
      %206 = vmatprep.subr.mxu0 0.0
      %207 = vmatpush1.msra.mxu0 0.0
      %208 = vmatprep.subr.mxu0 0.0
      %209 = vmatpush1.msra.mxu0 0.0
      %210 = vmatprep.subr.mxu0 0.0
      %211 = vmatpush1.msra.mxu0 0.0
      %212 = vmatprep.subr.mxu0 0.0
      %213 = vmatpush1.msra.mxu0 0.0
      %214 = vmatprep.subr.mxu0 0.0
      %215 = vmatpush1.msra.mxu0 0.0
      %216 = vmatprep.subr.mxu0 0.0
      %217 = vmatpush1.msra.mxu0 0.0
      %218 = vmatprep.subr.mxu0 0.0
      %219 = vmatpush1.msra.mxu0 0.0
      %220 = vmatprep.subr.mxu0 0.0
      %221 = vmatpush1.msra.mxu0 0.0
      %222 = vmatprep.mubr.f32.mxu0 0.0
      %223 = vmatmul.mubr.f32.gmra.mrb[0].mxu0 %v156
      %v224 = vpop.f32.mrb[0].mxu0
      %v225 = vadd.f32 %v153, %v224
      %v226 = vpop.f32.mrb[0].mxu0
      %227 = vdwg.mxu0
      %228 = vst [vmem:[#allocation8] sm:$0xff] %v225
    $region29: #{tpu_custom_call.1} parent=1 // pred_fallthru
      _
    // Predicated region
    $region30: #{tpu_custom_call.1} parent=1 // pred_check
      _
    $region31: #{tpu_custom_call.1} parent=1 // pred_check_branch
      %230 = sbr.rel (0) target = $region33
    $region32: #{tpu_custom_call.1} parent=1 // pred_region
      %s232 = ssub.s32 128, 128
      %233 = vsyncadd [#allocation5], %s232
      %s235 = sshll.u32 [#allocation8], 4
      %s236 = int_to_ptr.vmem [resolvable:$true] %s235
      %238 = dma.vmem_to_hbm [thread:$0]  %s236, 128, %s3, [#allocation5]
    $region33: #{tpu_custom_call.1} parent=1 // pred_fallthru
      _
    // Predicated region
    $region34: #{tpu_custom_call.1} parent=1 // pred_check
      _
    $region35: #{tpu_custom_call.1} parent=1 // pred_check_branch
      %240 = sbr.rel (0) target = $region37
    $region36: #{tpu_custom_call.1} parent=1 // pred_region
      %241 = dma.done [#allocation5], 128
    $region37: #{tpu_custom_call.1} parent=1 // pred_fallthru
      _
    %242 = vsyncpa [#allocation4], 1
    %243 = vsyncpa [#allocation7], 1
    %244 = vsyncpa [#allocation5], 1

</llo_original>
